<compile_context>
chip_gen: v5e
topology: v5e:2x2
jax: 0.10.0
libtpu: 0.0.40
codegen_flags: <defaults>
</compile_context>

<pallas_src>
import jax
import jax.numpy as jnp
from jax.experimental import pallas as pl
from jax.experimental.pallas import tpu as pltpu


# ----------------------------------------------------------------------------
# Wrapper-side layout plumbing (tiny tensors; no compute hoisting).
# ----------------------------------------------------------------------------
def _pack_weight(weight_t):
    """Phase-combined ConvTranspose2d(k=4, s=2, p=1) weight.

    weight_t: (Cin, Cout, 4, 4) PyTorch ConvTranspose2d layout.
    Returns (4*Cout, 9*Cin) bf16; rows ordered (ph, pw, co), columns ordered
    (a, b, ci), where (a, b) indexes the 9 shifted windows of the pad-1 input.
    Concat-based (no scatters); precompute once per weight.
    """
    Cin, Cout, K, _ = weight_t.shape
    w = weight_t.astype(jnp.float32)
    zeros = jnp.zeros((Cout, Cin), jnp.float32)
    row_blocks = []
    for ph in range(2):
        for pw in range(2):
            col_blocks = []
            for a in range(3):
                for b in range(3):
                    dh, dw = a - ph, b - pw
                    if 0 <= dh <= 1 and 0 <= dw <= 1:
                        kh = (K - 1 - ph) - 2 * dh
                        kw = (K - 1 - pw) - 2 * dw
                        col_blocks.append(w[:, :, kh, kw].T)      # (Cout, Cin)
                    else:
                        col_blocks.append(zeros)
            row_blocks.append(jnp.concatenate(col_blocks, axis=1))  # (Cout, 9*Cin)
    return jnp.concatenate(row_blocks, axis=0).astype(jnp.bfloat16)


def _build_patches(x, H, W):
    """Lane-dense im2col slab for the sub-pixel (stride-1) convs.

    x: (N, Cin, H, W).  Returns (9*Cin, N*H*W) bf16; rows (a, b, ci),
    columns (n, h, w).  Built in the wrapper so the kernel never does
    slice/reshape/concat relayout; input is tiny so the 9x traffic is noise.
    """
    N, Cin = x.shape[0], x.shape[1]
    xp = jnp.pad(x.astype(jnp.bfloat16), ((0, 0), (0, 0), (1, 1), (1, 1)))
    wins = [xp[:, :, a:a + H, b:b + W] for a in range(3) for b in range(3)]
    slab = jnp.stack(wins, axis=1)                        # (N, 9, Cin, H, W)
    slab = slab.reshape(N, 9 * Cin, H * W)
    return slab.transpose(1, 0, 2).reshape(9 * Cin, N * H * W)


def _pick_block_cols(nc, target=2048):
    """Largest multiple-of-128 divisor of nc that is <= target (else nc)."""
    if nc <= target:
        return nc
    for bc in range((min(target, nc) // 128) * 128, 127, -128):
        if nc % bc == 0:
            return bc
    return nc


# ----------------------------------------------------------------------------
# Fused kernel: conv + BN stats (phase 0), BN finalize + FMA + ReLU (phase 1).
# ----------------------------------------------------------------------------
def _make_fused_kernel(Cout, NC, eps):
    inv_count = 1.0 / float(4 * NC)          # BN count = N * 2H * 2W = 4 * NC

    def kernel(patch_ref, w_ref, gamma_ref, beta_ref, o_ref,
               conv_s, sum_s, sq_s):
        p = pl.program_id(0)                  # 0: conv + stats, 1: BN + ReLU
        j = pl.program_id(1)                  # column block index

        @pl.when(p == 0)
        def _():
            @pl.when(j == 0)
            def _():
                sum_s[...] = jnp.zeros_like(sum_s)
                sq_s[...] = jnp.zeros_like(sq_s)
            # One wide bf16 MXU matmul, f32 accumulation: (R,Kc) x (Kc,BC).
            acc = jnp.dot(w_ref[...], patch_ref[...],
                          preferred_element_type=jnp.float32)
            conv_s[j] = acc                               # VMEM-resident
            sum_s[...] += jnp.sum(acc, axis=1, keepdims=True)
            sq_s[...] += jnp.sum(acc * acc, axis=1, keepdims=True)

        @pl.when(p == 1)
        def _():
            rs = sum_s[...]
            rq = sq_s[...]
            # Fold the 4 sub-pixel phase rows into per-channel statistics.
            cs = (rs[0:Cout] + rs[Cout:2 * Cout]
                  + rs[2 * Cout:3 * Cout] + rs[3 * Cout:4 * Cout])
            cq = (rq[0:Cout] + rq[Cout:2 * Cout]
                  + rq[2 * Cout:3 * Cout] + rq[3 * Cout:4 * Cout])
            mean = cs * inv_count
            var = jnp.maximum(cq * inv_count - mean * mean, 0.0)
            scale_c = gamma_ref[...] * jax.lax.rsqrt(var + eps)
            shift_c = beta_ref[...] - mean * scale_c
            scale = jnp.concatenate([scale_c] * 4, axis=0)    # (R, 1)
            shift = jnp.concatenate([shift_c] * 4, axis=0)    # (R, 1)
            o_ref[...] = jnp.maximum(conv_s[j] * scale + shift, 0.0)

    return kernel


# ----------------------------------------------------------------------------
# Fallback (intermediate too big for VMEM): two kernels, bf16 HBM intermediate.
# ----------------------------------------------------------------------------
def _conv_stats_kernel(patch_ref, w_ref, conv_ref, sum_ref, sq_ref):
    acc = jnp.dot(w_ref[...], patch_ref[...], preferred_element_type=jnp.float32)
    # bf16 intermediate halves HBM traffic; stats come from the f32 accumulator
    # (BN is later applied to bf16-rounded values -- small, bounded mismatch).
    conv_ref[...] = acc.astype(conv_ref.dtype)
    sum_ref[0] = jnp.sum(acc, axis=1, keepdims=True)
    sq_ref[0] = jnp.sum(acc * acc, axis=1, keepdims=True)


def _bn_relu_kernel(conv_ref, scale_ref, shift_ref, o_ref):
    c = conv_ref[...].astype(jnp.float32)
    o_ref[...] = jnp.maximum(c * scale_ref[...] + shift_ref[...], 0.0)


# ----------------------------------------------------------------------------
# Forward pass.
# ----------------------------------------------------------------------------
def g_block_forward(x_nchw, weight_t, gamma, beta, *, eps=1e-5):
    """G_block forward: ConvTranspose2d(k=4,s=2,p=1,no bias) + BN(train) + ReLU.

    x_nchw:   (N, Cin, H, W)      weight_t: (Cin, Cout, 4, 4)
    gamma, beta: (Cout,)          returns (N, Cout, 2H, 2W) float32.
    """
    N, Cin, H, W = x_nchw.shape
    K = 4
    assert weight_t.shape[0] == Cin and weight_t.shape[2:] == (K, K), (
        "kernel specialised to kernel_size=4, stride=2, padding=1")
    Cout = weight_t.shape[1]
    R, Kc = 4 * Cout, 9 * Cin
    NC = N * H * W

    # Layout plumbing (tiny): bf16 phase-combined weight + bf16 im2col slab.
    w_all = _pack_weight(weight_t)                    # (R, Kc)  bf16
    patches = _build_patches(x_nchw, H, W)            # (Kc, NC) bf16
    gamma_c = gamma.astype(jnp.float32).reshape(Cout, 1)
    beta_c = beta.astype(jnp.float32).reshape(Cout, 1)

    # Per-generation VMEM budget (64 MiB/TC on v7x, 128 MiB on v5e/v6e).
    try:
        vmem_cap = int(pltpu.get_tpu_info().vmem_capacity_bytes)
    except Exception:
        vmem_cap = 64 * 1024 * 1024                   # conservative (v7x)

    BC = _pick_block_cols(NC)                         # >= 512 lanes when possible
    NB = NC // BC
    conv_bytes = R * NC * 4                           # f32 VMEM-resident intermediate
    work_bytes = 2 * (Kc * BC * 2) + 2 * (R * BC * 4) + R * Kc * 2 + (1 << 20)
    use_fused = conv_bytes + work_bytes <= int(0.6 * vmem_cap)
    vmem_limit = int(min(max(2 * (conv_bytes + work_bytes), 32 << 20),
                         int(0.9 * vmem_cap)))
    matmul_flops = 2 * R * Kc * NC

    if use_fused:
        kernel = _make_fused_kernel(Cout, NC, eps)
        out_t = pl.pallas_call(
            kernel,
            grid=(2, NB),
            in_specs=[
                # Column block j during the conv phase; pinned to the last
                # fetched block during the BN phase (no redundant re-fetch).
                pl.BlockSpec((Kc, BC),
                             lambda p, j: (0, j * (1 - p) + (NB - 1) * p)),
                pl.BlockSpec((R, Kc), lambda p, j: (0, 0)),
                pl.BlockSpec((Cout, 1), lambda p, j: (0, 0)),
                pl.BlockSpec((Cout, 1), lambda p, j: (0, 0)),
            ],
            # Written only in phase 1; pinned to block 0 during phase 0 so no
            # garbage output writeback happens before the BN phase.
            out_specs=pl.BlockSpec((R, BC), lambda p, j: (0, j * p)),
            out_shape=jax.ShapeDtypeStruct((R, NC), jnp.float32),
            scratch_shapes=[
                pltpu.VMEM((NB, R, BC), jnp.float32),   # conv intermediate (persists)
                pltpu.VMEM((R, 1), jnp.float32),        # BN sum accumulator
                pltpu.VMEM((R, 1), jnp.float32),        # BN sum-of-squares accumulator
            ],
            compiler_params=pltpu.CompilerParams(
                # Both axes sequential: batch-norm statistics (and the VMEM-
                # resident intermediate) couple every column block, so megacore
                # parallelism is traded for removing the HBM round trip.
                dimension_semantics=("arbitrary", "arbitrary"),
                vmem_limit_bytes=vmem_limit),
            cost_estimate=pl.CostEstimate(
                flops=matmul_flops + 8 * R * NC,
                transcendentals=Cout * NB,
                bytes_accessed=Kc * NC * 2 + R * Kc * 2 + R * NC * 4),
        )(patches, w_all, gamma_c, beta_c)
    else:
        # ---- fallback: two kernels, bf16 HBM intermediate, megacore-parallel.
        conv_bf, sums, sqs = pl.pallas_call(
            _conv_stats_kernel,
            grid=(NB,),
            in_specs=[
                pl.BlockSpec((Kc, BC), lambda j: (0, j)),
                pl.BlockSpec((R, Kc), lambda j: (0, 0)),
            ],
            out_specs=[
                pl.BlockSpec((R, BC), lambda j: (0, j)),
                pl.BlockSpec((1, R, 1), lambda j: (j, 0, 0)),
                pl.BlockSpec((1, R, 1), lambda j: (j, 0, 0)),
            ],
            out_shape=[
                jax.ShapeDtypeStruct((R, NC), jnp.bfloat16),
                jax.ShapeDtypeStruct((NB, R, 1), jnp.float32),
                jax.ShapeDtypeStruct((NB, R, 1), jnp.float32),
            ],
            compiler_params=pltpu.CompilerParams(
                dimension_semantics=("parallel",),
                vmem_limit_bytes=vmem_limit),
            cost_estimate=pl.CostEstimate(
                flops=matmul_flops + 4 * R * NC, transcendentals=0,
                bytes_accessed=Kc * NC * 2 + R * Kc * 2 + R * NC * 2),
        )(patches, w_all)

        count = 4.0 * NC
        ch_sum = sums[:, :, 0].sum(axis=0).reshape(4, Cout).sum(axis=0)
        ch_sq = sqs[:, :, 0].sum(axis=0).reshape(4, Cout).sum(axis=0)
        mean = ch_sum / count
        var = jnp.maximum(ch_sq / count - mean * mean, 0.0)
        scale = gamma.astype(jnp.float32) * jax.lax.rsqrt(var + eps)
        shift = beta.astype(jnp.float32) - mean * scale
        scale_rows = jnp.tile(scale, 4).reshape(R, 1)
        shift_rows = jnp.tile(shift, 4).reshape(R, 1)

        out_t = pl.pallas_call(
            _bn_relu_kernel,
            grid=(NB,),
            in_specs=[
                pl.BlockSpec((R, BC), lambda j: (0, j)),
                pl.BlockSpec((R, 1), lambda j: (0, 0)),
                pl.BlockSpec((R, 1), lambda j: (0, 0)),
            ],
            out_specs=pl.BlockSpec((R, BC), lambda j: (0, j)),
            out_shape=jax.ShapeDtypeStruct((R, NC), jnp.float32),
            compiler_params=pltpu.CompilerParams(
                dimension_semantics=("parallel",),
                vmem_limit_bytes=vmem_limit),
            cost_estimate=pl.CostEstimate(
                flops=3 * R * NC, transcendentals=0,
                bytes_accessed=R * NC * 2 + R * NC * 4),
        )(conv_bf, scale_rows, shift_rows)

    # Sub-pixel phase interleave back to NCHW (pure layout; left to XLA).
    # TODO(synk): fold this interleave into the phase-1 store (strided on-chip
    # stores) to save one output-sized HBM round trip.
    out6 = out_t.reshape(2, 2, Cout, N, H, W)            # (ph, pw, co, n, h, w)
    return out6.transpose(3, 2, 4, 0, 5, 1).reshape(N, Cout, 2 * H, 2 * W)


# ----------------------------------------------------------------------------
# Pure-JAX reference (f32) for the same forward pass.
# ----------------------------------------------------------------------------
def _jax_reference(x_nchw, weight_t, gamma, beta,
                   *, stride=2, kernel_size=4, padding=1):
    K = kernel_size
    x_nhwc = jnp.transpose(x_nchw, (0, 2, 3, 1)).astype(jnp.float32)
    w_conv = jnp.transpose(weight_t[:, :, ::-1, ::-1], (2, 3, 0, 1)).astype(jnp.float32)
    pad = K - 1 - padding
    conv = jax.lax.conv_general_dilated(
        x_nhwc, w_conv, window_strides=(1, 1),
        padding=[(pad, pad), (pad, pad)], lhs_dilation=(stride, stride),
        dimension_numbers=("NHWC", "HWIO", "NHWC"))
    mean = jnp.mean(conv, axis=(0, 1, 2), keepdims=True)
    var = jnp.mean((conv - mean) ** 2, axis=(0, 1, 2), keepdims=True)
    y = (conv - mean) * jax.lax.rsqrt(var + 1e-5)
    y = y * gamma.reshape(1, 1, 1, -1) + beta.reshape(1, 1, 1, -1)
    y = jnp.maximum(y, 0.0)
    return jnp.transpose(y, (0, 3, 1, 2))


if __name__ == "__main__":
    # Small shapes consistent with the module: nz=3 input channels, channels=4.
    N, NZ, H, W = 2, 3, 16, 16
    CHANNELS, K = 4, 4

    key = jax.random.PRNGKey(0)
    kx, kw = jax.random.split(key)

    x = jax.random.normal(kx, (N, NZ, H, W), dtype=jnp.float32)
    # ConvTranspose2d weight shape: (in_channels=nz, out_channels=channels, K, K)
    weight_t = 0.02 * jax.random.normal(kw, (NZ, CHANNELS, K, K), dtype=jnp.float32)
    gamma = jnp.ones((CHANNELS,), jnp.float32)    # BatchNorm2d default affine init
    beta = jnp.zeros((CHANNELS,), jnp.float32)

    out = jax.block_until_ready(g_block_forward(x, weight_t, gamma, beta))
    ref = jax.block_until_ready(_jax_reference(x, weight_t, gamma, beta))

    assert out.shape == (N, CHANNELS, 2 * H, 2 * W), out.shape
    max_err = float(jnp.max(jnp.abs(out - ref)))
    # bf16 MXU inputs (f32 accumulation) vs f32 reference -> small tolerance.
    assert max_err < 5e-2, max_err

    print("KERNEL_OK")
</pallas_src>

<mosaic_0001>
module attributes {stable_mosaic.version = 11 : i64} {
  func.func @kernel(%arg0: i32, %arg1: i32, %arg2: memref<27x512xbf16, #tpu.memory_space<vmem>>, %arg3: memref<16x27xbf16, #tpu.memory_space<vmem>>, %arg4: memref<4x1xf32, #tpu.memory_space<vmem>>, %arg5: memref<4x1xf32, #tpu.memory_space<vmem>>, %arg6: memref<16x512xf32, #tpu.memory_space<vmem>>, %arg7: memref<1x16x512xf32, #tpu.memory_space<vmem>>, %arg8: memref<16x1xf32, #tpu.memory_space<vmem>>, %arg9: memref<16x1xf32, #tpu.memory_space<vmem>>) attributes {dimension_semantics = [#tpu.dimension_semantics<arbitrary>, #tpu.dimension_semantics<arbitrary>], iteration_bounds = array<i64: 2, 1>, scalar_prefetch = 0 : i64, scratch_operands = 3 : i64, tpu.core_type = #tpu.core_type<tc>, window_params = [{transform_indices = @transform_0, window_bounds = array<i64: 27, 512>}, {pipeline_mode = #tpu.pipeline_mode<synchronous>, transform_indices = @transform_1, window_bounds = array<i64: 16, 27>}, {pipeline_mode = #tpu.pipeline_mode<synchronous>, transform_indices = @transform_2, window_bounds = array<i64: 4, 1>}, {pipeline_mode = #tpu.pipeline_mode<synchronous>, transform_indices = @transform_3, window_bounds = array<i64: 4, 1>}, {transform_indices = @transform_4, window_bounds = array<i64: 16, 512>}]} {
    %c0_i32 = arith.constant 0 : i32
    %0 = arith.cmpi eq, %arg0, %c0_i32 : i32
    %1 = arith.extui %0 : i1 to i32
    %c0_i32_0 = arith.constant 0 : i32
    %2 = arith.cmpi ne, %1, %c0_i32_0 : i32
    scf.if %2 {
      %c0_i32_2 = arith.constant 0 : i32
      %6 = arith.cmpi eq, %arg1, %c0_i32_2 : i32
      %7 = arith.extui %6 : i1 to i32
      %c0_i32_3 = arith.constant 0 : i32
      %8 = arith.cmpi ne, %7, %c0_i32_3 : i32
      scf.if %8 {
        %cst_19 = arith.constant 0.000000e+00 : f32
        %27 = vector.broadcast %cst_19 : f32 to vector<16x1xf32>
        %c0_20 = arith.constant 0 : index
        %c0_21 = arith.constant 0 : index
        %28 = vector.load %arg8[%c0_20, %c0_21] : memref<16x1xf32, #tpu.memory_space<vmem>>, vector<16x1xf32>
        tpu.vector_store %arg8[%c0_20, %c0_21], %27 {strides = array<i32>} : memref<16x1xf32, #tpu.memory_space<vmem>>, vector<16x1xf32>,
        %cst_22 = arith.constant 0.000000e+00 : f32
        %29 = vector.broadcast %cst_22 : f32 to vector<16x1xf32>
        %c0_23 = arith.constant 0 : index
        %c0_24 = arith.constant 0 : index
        %30 = vector.load %arg9[%c0_23, %c0_24] : memref<16x1xf32, #tpu.memory_space<vmem>>, vector<16x1xf32>
        tpu.vector_store %arg9[%c0_23, %c0_24], %29 {strides = array<i32>} : memref<16x1xf32, #tpu.memory_space<vmem>>, vector<16x1xf32>,
      } else {
      }
      %c0 = arith.constant 0 : index
      %c0_4 = arith.constant 0 : index
      %9 = vector.load %arg3[%c0, %c0_4] : memref<16x27xbf16, #tpu.memory_space<vmem>>, vector<16x27xbf16>
      %c0_5 = arith.constant 0 : index
      %c0_6 = arith.constant 0 : index
      %10 = vector.load %arg2[%c0_5, %c0_6] : memref<27x512xbf16, #tpu.memory_space<vmem>>, vector<27x512xbf16>
      %cst = arith.constant dense<0.000000e+00> : vector<16x512xf32>
      %11 = tpu.matmul %9, %10, %cst {dimension_numbers = #tpu.dot_dimension_numbers<[1], [0], [0], [1], [0, 0, 1, 1], [], []>} : vector<16x27xbf16>, vector<27x512xbf16>, vector<16x512xf32> -> vector<16x512xf32>
      %12 = arith.index_cast %arg1 : i32 to index
      %c0_7 = arith.constant 0 : index
      %c0_8 = arith.constant 0 : index
      %13 = vector.load %arg7[%12, %c0_7, %c0_8] : memref<1x16x512xf32, #tpu.memory_space<vmem>>, vector<1x16x512xf32>
      %14 = vector.shape_cast %13 : vector<1x16x512xf32> to vector<16x512xf32>
      %15 = vector.shape_cast %11 : vector<16x512xf32> to vector<1x16x512xf32>
      tpu.vector_store %arg7[%12, %c0_7, %c0_8], %15 {strides = array<i32>} : memref<1x16x512xf32, #tpu.memory_space<vmem>>, vector<1x16x512xf32>,
      %c0_9 = arith.constant 0 : index
      %c0_10 = arith.constant 0 : index
      %16 = vector.load %arg8[%c0_9, %c0_10] : memref<16x1xf32, #tpu.memory_space<vmem>>, vector<16x1xf32>
      %cst_11 = arith.constant dense<0.000000e+00> : vector<16xf32>
      %17 = vector.multi_reduction <add>, %11, %cst_11 [1] : vector<16x512xf32> to vector<16xf32>
      %18 = vector.shape_cast %17 : vector<16xf32> to vector<16x1xf32>
      %19 = arith.addf %16, %18 : vector<16x1xf32>
      %c0_12 = arith.constant 0 : index
      %c0_13 = arith.constant 0 : index
      %20 = vector.load %arg8[%c0_12, %c0_13] : memref<16x1xf32, #tpu.memory_space<vmem>>, vector<16x1xf32>
      tpu.vector_store %arg8[%c0_12, %c0_13], %19 {strides = array<i32>} : memref<16x1xf32, #tpu.memory_space<vmem>>, vector<16x1xf32>,
      %c0_14 = arith.constant 0 : index
      %c0_15 = arith.constant 0 : index
      %21 = vector.load %arg9[%c0_14, %c0_15] : memref<16x1xf32, #tpu.memory_space<vmem>>, vector<16x1xf32>
      %22 = arith.mulf %11, %11 : vector<16x512xf32>
      %cst_16 = arith.constant dense<0.000000e+00> : vector<16xf32>
      %23 = vector.multi_reduction <add>, %22, %cst_16 [1] : vector<16x512xf32> to vector<16xf32>
      %24 = vector.shape_cast %23 : vector<16xf32> to vector<16x1xf32>
      %25 = arith.addf %21, %24 : vector<16x1xf32>
      %c0_17 = arith.constant 0 : index
      %c0_18 = arith.constant 0 : index
      %26 = vector.load %arg9[%c0_17, %c0_18] : memref<16x1xf32, #tpu.memory_space<vmem>>, vector<16x1xf32>
      tpu.vector_store %arg9[%c0_17, %c0_18], %25 {strides = array<i32>} : memref<16x1xf32, #tpu.memory_space<vmem>>, vector<16x1xf32>,
    } else {
    }
    %c1_i32 = arith.constant 1 : i32
    %3 = arith.cmpi eq, %arg0, %c1_i32 : i32
    %4 = arith.extui %3 : i1 to i32
    %c0_i32_1 = arith.constant 0 : i32
    %5 = arith.cmpi ne, %4, %c0_i32_1 : i32
    scf.if %5 {
      %c0 = arith.constant 0 : index
      %c0_2 = arith.constant 0 : index
      %6 = vector.load %arg8[%c0, %c0_2] : memref<16x1xf32, #tpu.memory_space<vmem>>, vector<16x1xf32>
      %c0_3 = arith.constant 0 : index
      %c0_4 = arith.constant 0 : index
      %7 = vector.load %arg9[%c0_3, %c0_4] : memref<16x1xf32, #tpu.memory_space<vmem>>, vector<16x1xf32>
      %8 = vector.extract_strided_slice %6 {offsets = [0, 0], sizes = [4, 1], strides = [1, 1]} : vector<16x1xf32> to vector<4x1xf32>
      %9 = vector.extract_strided_slice %6 {offsets = [4, 0], sizes = [4, 1], strides = [1, 1]} : vector<16x1xf32> to vector<4x1xf32>
      %10 = arith.addf %8, %9 : vector<4x1xf32>
      %11 = vector.extract_strided_slice %6 {offsets = [8, 0], sizes = [4, 1], strides = [1, 1]} : vector<16x1xf32> to vector<4x1xf32>
      %12 = arith.addf %10, %11 : vector<4x1xf32>
      %13 = vector.extract_strided_slice %6 {offsets = [12, 0], sizes = [4, 1], strides = [1, 1]} : vector<16x1xf32> to vector<4x1xf32>
      %14 = arith.addf %12, %13 : vector<4x1xf32>
      %15 = vector.extract_strided_slice %7 {offsets = [0, 0], sizes = [4, 1], strides = [1, 1]} : vector<16x1xf32> to vector<4x1xf32>
      %16 = vector.extract_strided_slice %7 {offsets = [4, 0], sizes = [4, 1], strides = [1, 1]} : vector<16x1xf32> to vector<4x1xf32>
      %17 = arith.addf %15, %16 : vector<4x1xf32>
      %18 = vector.extract_strided_slice %7 {offsets = [8, 0], sizes = [4, 1], strides = [1, 1]} : vector<16x1xf32> to vector<4x1xf32>
      %19 = arith.addf %17, %18 : vector<4x1xf32>
      %20 = vector.extract_strided_slice %7 {offsets = [12, 0], sizes = [4, 1], strides = [1, 1]} : vector<16x1xf32> to vector<4x1xf32>
      %21 = arith.addf %19, %20 : vector<4x1xf32>
      %cst = arith.constant 4.8828125E-4 : f32
      %22 = vector.broadcast %cst : f32 to vector<4x1xf32>
      %23 = arith.mulf %14, %22 : vector<4x1xf32>
      %cst_5 = arith.constant 4.8828125E-4 : f32
      %24 = vector.broadcast %cst_5 : f32 to vector<4x1xf32>
      %25 = arith.mulf %21, %24 : vector<4x1xf32>
      %26 = arith.mulf %23, %23 : vector<4x1xf32>
      %27 = arith.subf %25, %26 : vector<4x1xf32>
      %cst_6 = arith.constant 0.000000e+00 : f32
      %28 = vector.broadcast %cst_6 : f32 to vector<4x1xf32>
      %29 = arith.maximumf %27, %28 : vector<4x1xf32>
      %c0_7 = arith.constant 0 : index
      %c0_8 = arith.constant 0 : index
      %30 = vector.load %arg4[%c0_7, %c0_8] : memref<4x1xf32, #tpu.memory_space<vmem>>, vector<4x1xf32>
      %cst_9 = arith.constant 9.99999974E-6 : f32
      %31 = vector.broadcast %cst_9 : f32 to vector<4x1xf32>
      %32 = arith.addf %29, %31 : vector<4x1xf32>
      %33 = math.rsqrt %32 : vector<4x1xf32>
      %34 = arith.mulf %30, %33 : vector<4x1xf32>
      %c0_10 = arith.constant 0 : index
      %c0_11 = arith.constant 0 : index
      %35 = vector.load %arg5[%c0_10, %c0_11] : memref<4x1xf32, #tpu.memory_space<vmem>>, vector<4x1xf32>
      %36 = arith.mulf %23, %34 : vector<4x1xf32>
      %37 = arith.subf %35, %36 : vector<4x1xf32>
      %38 = tpu.concatenate %34, %34, %34, %34 in 0 : vector<4x1xf32>, vector<4x1xf32>, vector<4x1xf32>, vector<4x1xf32> -> vector<16x1xf32>
      %39 = tpu.concatenate %37, %37, %37, %37 in 0 : vector<4x1xf32>, vector<4x1xf32>, vector<4x1xf32>, vector<4x1xf32> -> vector<16x1xf32>
      %40 = arith.index_cast %arg1 : i32 to index
      %c0_12 = arith.constant 0 : index
      %c0_13 = arith.constant 0 : index
      %41 = vector.load %arg7[%40, %c0_12, %c0_13] : memref<1x16x512xf32, #tpu.memory_space<vmem>>, vector<1x16x512xf32>
      %42 = vector.shape_cast %41 : vector<1x16x512xf32> to vector<16x512xf32>
      %43 = vector.broadcast %38 : vector<16x1xf32> to vector<16x512xf32>
      %44 = arith.mulf %42, %43 : vector<16x512xf32>
      %45 = vector.broadcast %39 : vector<16x1xf32> to vector<16x512xf32>
      %46 = arith.addf %44, %45 : vector<16x512xf32>
      %cst_14 = arith.constant 0.000000e+00 : f32
      %47 = vector.broadcast %cst_14 : f32 to vector<16x512xf32>
      %48 = arith.maximumf %46, %47 : vector<16x512xf32>
      %c0_15 = arith.constant 0 : index
      %c0_16 = arith.constant 0 : index
      %49 = vector.load %arg6[%c0_15, %c0_16] : memref<16x512xf32, #tpu.memory_space<vmem>>, vector<16x512xf32>
      tpu.vector_store %arg6[%c0_15, %c0_16], %48 {strides = array<i32>} : memref<16x512xf32, #tpu.memory_space<vmem>>, vector<16x512xf32>,
    } else {
    }
    return
  }
  func.func @transform_0(%arg0: i32, %arg1: i32) -> (i32, i32) {
    %c1_i32 = arith.constant 1 : i32
    %0 = arith.subi %c1_i32, %arg0 : i32
    %1 = arith.muli %arg1, %0 : i32
    %c0_i32 = arith.constant 0 : i32
    %2 = arith.muli %c0_i32, %arg0 : i32
    %3 = arith.addi %1, %2 : i32
    %c0_i32_0 = arith.constant 0 : i32
    %c0_i32_1 = arith.constant 0 : i32
    return %c0_i32_0, %3 : i32, i32
  }
  func.func @transform_1(%arg0: i32, %arg1: i32) -> (i32, i32) {
    %c0_i32 = arith.constant 0 : i32
    %c0_i32_0 = arith.constant 0 : i32
    %c0_i32_1 = arith.constant 0 : i32
    return %c0_i32, %c0_i32_0 : i32, i32
  }
  func.func @transform_2(%arg0: i32, %arg1: i32) -> (i32, i32) {
    %c0_i32 = arith.constant 0 : i32
    %c0_i32_0 = arith.constant 0 : i32
    %c0_i32_1 = arith.constant 0 : i32
    return %c0_i32, %c0_i32_0 : i32, i32
  }
  func.func @transform_3(%arg0: i32, %arg1: i32) -> (i32, i32) {
    %c0_i32 = arith.constant 0 : i32
    %c0_i32_0 = arith.constant 0 : i32
    %c0_i32_1 = arith.constant 0 : i32
    return %c0_i32, %c0_i32_0 : i32, i32
  }
  func.func @transform_4(%arg0: i32, %arg1: i32) -> (i32, i32) {
    %0 = arith.muli %arg1, %arg0 : i32
    %c0_i32 = arith.constant 0 : i32
    %c0_i32_0 = arith.constant 0 : i32
    return %c0_i32, %0 : i32, i32
  }
}

</mosaic_0001>

<llo_original>
// kernel: tpu_custom_call.1
$region0: #{tpu_custom_call.1}
  #allocation0 [shape = 'u32[]', space=smem, size = 0x4, offset = 0x4, fixed_abs, tag = 'smem constant byte address 0x4 - core index']
  #allocation1 [shape = 'u32[72,128]{1,0:T(1,128)}', space=vmem, size = 0x9000, scoped, tag = 'internal scratch']
  #allocation2 [shape = 'f32[1,16,512]{2,1,0:T(8,128)}', space=vmem, size = 0x8000, scoped, tag = 'scratch operand']
  #allocation3 [shape = 'f32[16,1]{1,0:T(8,128)}', space=vmem, size = 0x2000, scoped, tag = 'scratch operand']
  #allocation4 [shape = 'f32[16,1]{1,0:T(8,128)}', space=vmem, size = 0x2000, scoped, tag = 'scratch operand']
  %s0 = inlined_call_operand.hbm [shape: bf16[27,512], index: 0, kind: input, shape index: {}]
  %s1 = inlined_call_operand.vmem [shape: bf16[16,27], index: 1, kind: input, shape index: {}]
  %s2 = inlined_call_operand.vmem [shape: f32[4,1], index: 2, kind: input, shape index: {}]
  %s3 = inlined_call_operand.vmem [shape: f32[4,1], index: 3, kind: input, shape index: {}]
  %s4 = inlined_call_operand.hbm [shape: f32[16,512], index: 4, kind: output, shape index: {}]
  %s5 = sld [smem:[#allocation0]]
  $region65: #{tpu_custom_call.1} parent=0
    _
  %s7 = ssub.s32 1, %s5
  %s8 = scalar_select 0, %s7, %s5
  $region1: #{tpu_custom_call.1} parent=0
    #allocation5 [shape = 'u8[65536]{0}', space=vmem, size = 0x10000, scoped, tag = 'input window, operand 0']
    #allocation6 [shape = 's32[2]{0}', space=sflag, size = 0x8, scoped, tag = 'scoped memory for tpu_custom_call.1']
    #allocation7 [shape = 's32[2]{0}', space=sflag, size = 0x8, scoped, tag = 'scoped memory for tpu_custom_call.1']
    #allocation8 [shape = 'u8[65536]{0}', space=vmem, size = 0x10000, scoped, tag = 'output window, operand 0']
    %9 = vsyncpa [#allocation6], 0
    %s10 = scalar_lea.sflag [#allocation6], 1
    %11 = vsyncpa %s10, 0
    %12 = vsyncpa [#allocation7], 0
    %s13 = scalar_lea.sflag [#allocation7], 1
    %14 = vsyncpa %s13, 0
    loop: start=0, step=1, limit=4
    $region2: #{tpu_custom_call.1} parent=1 // loop_pre_header
      _
    $region3: #{tpu_custom_call.1} parent=1 // loop_header
      %s16 = sphi 0, %s20
      %p17 = scmp.ge.s32.totalorder %s16, 4
      %s23 = sphi 0, %s35
      %s24 = sphi 0, %s31
      %s25 = sphi 0, %s23
      %s26 = sphi 0, %s24
      %s27 = sphi 0, %s25
      %s28 = sphi 0, %s26
      %s42 = sphi 0, %s44
      %s45 = sphi 0, %s42
      %s46 = sphi 0, %s45
      %s62 = sphi 0, %s46
      %s66 = sphi 0, %s66
      %s68 = sphi 0, %s66
      %s69 = sphi 0, %s68
      %s83 = sphi 0, %s69
      %s87 = sphi 0, %s87
      %s89 = sphi 0, %s87
      %s90 = sphi 0, %s89
      %s104 = sphi 0, %s90
      %s108 = sphi 0, %s108
      %s110 = sphi 0, %s108
      %s111 = sphi 0, %s110
      %s125 = sphi 0, %s111
      %s133 = sphi 0, %s135
      %s136 = sphi 0, %s133
      %s137 = sphi 0, %s136
      %s153 = sphi 0, %s137
    $region4: #{tpu_custom_call.1} parent=1 // loop_header_branch
      %19 = sbr.rel (%p17) target = $region8
    $region5: #{tpu_custom_call.1} parent=1 // loop_body
      %s21 = ssub.s32 %s16, 1
      %s22 = ssub.s32 %s16, 2
      %s29 = sadd.s32 1, %s24
      %p30 = scmp.ge.s32.totalorder %s29, 1
      %s31 = scalar_select %p30, 0, %s29
      %s32 = sadd.s32 1, %s23
      %s33 = scalar_select %p30, %s32, %s23
      %p34 = scmp.ge.s32.totalorder %s33, 2
      %s35 = scalar_select %p34, 0, %s33
      %s36 = ssub.s32 1, %s23
      %s37 = smul.u32 %s24, %s36
      %s38 = ssub.s32 1, %s35
      %s39 = smul.u32 %s31, %s38
      %s40 = ssub.s32 %s37, %s39
      %p41 = scmp.eq.s32.totalorder %s40, 0
      %s43 = sadd.s32 %s42, 1
      %s44 = scalar_select %p41, %s42, %s43
      %p47 = pneg %p41
      %p48 = scmp.eq.s32.totalorder %s16, 1
      %p49 = por %p47, %p48
      %p50 = scmp.ne.s32.totalorder %s42, %s45
      %p51 = scmp.eq.s32.totalorder %s16, 0
      %p52 = por %p50, %p51
      %p53 = scmp.ne.s32.totalorder %s42, %s45
      %p54 = scmp.eq.s32.totalorder %s21, 1
      %p55 = por %p53, %p54
      %p56 = scmp.ne.s32.totalorder %s45, %s46
      %p57 = scmp.eq.s32.totalorder %s21, 0
      %p58 = por %p56, %p57
      %p59 = scmp.ne.s32.totalorder %s45, %s46
      %p60 = scmp.eq.s32.totalorder %s22, 1
      %p61 = por %p59, %p60
      %p63 = scmp.ne.s32.totalorder %s46, %s62
      %p64 = scmp.eq.s32.totalorder %s22, 0
      %p65 = por %p63, %p64
      %s67 = sadd.s32 %s66, 1
      %p70 = scmp.eq.s32.totalorder %s16, 1
      %p71 = scmp.ne.s32.totalorder %s66, %s68
      %p72 = scmp.eq.s32.totalorder %s16, 0
      %p73 = por %p71, %p72
      %p74 = scmp.ne.s32.totalorder %s66, %s68
      %p75 = scmp.eq.s32.totalorder %s21, 1
      %p76 = por %p74, %p75
      %p77 = scmp.ne.s32.totalorder %s68, %s69
      %p78 = scmp.eq.s32.totalorder %s21, 0
      %p79 = por %p77, %p78
      %p80 = scmp.ne.s32.totalorder %s68, %s69
      %p81 = scmp.eq.s32.totalorder %s22, 1
      %p82 = por %p80, %p81
      %p84 = scmp.ne.s32.totalorder %s69, %s83
      %p85 = scmp.eq.s32.totalorder %s22, 0
      %p86 = por %p84, %p85
      %s88 = sadd.s32 %s87, 1
      %p91 = scmp.eq.s32.totalorder %s16, 1
      %p92 = scmp.ne.s32.totalorder %s87, %s89
      %p93 = scmp.eq.s32.totalorder %s16, 0
      %p94 = por %p92, %p93
      %p95 = scmp.ne.s32.totalorder %s87, %s89
      %p96 = scmp.eq.s32.totalorder %s21, 1
      %p97 = por %p95, %p96
      %p98 = scmp.ne.s32.totalorder %s89, %s90
      %p99 = scmp.eq.s32.totalorder %s21, 0
      %p100 = por %p98, %p99
      %p101 = scmp.ne.s32.totalorder %s89, %s90
      %p102 = scmp.eq.s32.totalorder %s22, 1
      %p103 = por %p101, %p102
      %p105 = scmp.ne.s32.totalorder %s90, %s104
      %p106 = scmp.eq.s32.totalorder %s22, 0
      %p107 = por %p105, %p106
      %s109 = sadd.s32 %s108, 1
      %p112 = scmp.eq.s32.totalorder %s16, 1
      %p113 = scmp.ne.s32.totalorder %s108, %s110
      %p114 = scmp.eq.s32.totalorder %s16, 0
      %p115 = por %p113, %p114
      %p116 = scmp.ne.s32.totalorder %s108, %s110
      %p117 = scmp.eq.s32.totalorder %s21, 1
      %p118 = por %p116, %p117
      %p119 = scmp.ne.s32.totalorder %s110, %s111
      %p120 = scmp.eq.s32.totalorder %s21, 0
      %p121 = por %p119, %p120
      %p122 = scmp.ne.s32.totalorder %s110, %s111
      %p123 = scmp.eq.s32.totalorder %s22, 1
      %p124 = por %p122, %p123
      %p126 = scmp.ne.s32.totalorder %s111, %s125
      %p127 = scmp.eq.s32.totalorder %s22, 0
      %p128 = por %p126, %p127
      %s129 = smul.u32 %s24, %s23
      %s130 = smul.u32 %s31, %s35
      %s131 = ssub.s32 %s129, %s130
      %p132 = scmp.eq.s32.totalorder %s131, 0
      %s134 = sadd.s32 %s133, 1
      %s135 = scalar_select %p132, %s133, %s134
      %p138 = pneg %p132
      %p139 = scmp.eq.s32.totalorder %s16, 1
      %p140 = por %p138, %p139
      %p141 = scmp.ne.s32.totalorder %s133, %s136
      %p142 = scmp.eq.s32.totalorder %s16, 0
      %p143 = por %p141, %p142
      %p144 = scmp.ne.s32.totalorder %s133, %s136
      %p145 = scmp.eq.s32.totalorder %s21, 1
      %p146 = por %p144, %p145
      %p147 = scmp.ne.s32.totalorder %s136, %s137
      %p148 = scmp.eq.s32.totalorder %s21, 0
      %p149 = por %p147, %p148
      %p150 = scmp.ne.s32.totalorder %s136, %s137
      %p151 = scmp.eq.s32.totalorder %s22, 1
      %p152 = por %p150, %p151
      %p154 = scmp.ne.s32.totalorder %s137, %s153
      %p155 = scmp.eq.s32.totalorder %s22, 0
      %p156 = por %p154, %p155
      %p157 = scmp.le.s32.totalorder 1, %s16
      %p158 = scmp.lt.s32.totalorder %s16, 3
      %p159 = pnand %p157, %p158
      %p160 = pneg %p159
      // Predicated region
      $region9: #{tpu_custom_call.1} parent=5 // pred_check
        _
      $region10: #{tpu_custom_call.1} parent=5 // pred_check_branch
        %162 = sbr.rel (%p159) target = $region12
      $region11: #{tpu_custom_call.1} parent=5 // pred_region
        %s163 = ssub.s32 %s16, 1
        // Predicated region
        $region13: #{tpu_custom_call.1} parent=11 // pred_check
          %p164 = pneg %p79
        $region14: #{tpu_custom_call.1} parent=11 // pred_check_branch
          %166 = sbr.rel (%p164) target = $region16
        $region15: #{tpu_custom_call.1} parent=11 // pred_region
          _
        $region16: #{tpu_custom_call.1} parent=11 // pred_fallthru
          _
        // Predicated region
        $region17: #{tpu_custom_call.1} parent=11 // pred_check
          %p167 = pneg %p100
        $region18: #{tpu_custom_call.1} parent=11 // pred_check_branch
          %169 = sbr.rel (%p167) target = $region20
        $region19: #{tpu_custom_call.1} parent=11 // pred_region
          _
        $region20: #{tpu_custom_call.1} parent=11 // pred_fallthru
          _
        // Predicated region
        $region21: #{tpu_custom_call.1} parent=11 // pred_check
          %p170 = pneg %p121
        $region22: #{tpu_custom_call.1} parent=11 // pred_check_branch
          %172 = sbr.rel (%p170) target = $region24
        $region23: #{tpu_custom_call.1} parent=11 // pred_region
          _
        $region24: #{tpu_custom_call.1} parent=11 // pred_fallthru
          _
      $region12: #{tpu_custom_call.1} parent=5 // pred_fallthru
        _
      %p173 = scmp.lt.s32.totalorder %s16, 2
      // Predicated region
      $region25: #{tpu_custom_call.1} parent=5 // pred_check
        %p174 = pneg %p173
      $region26: #{tpu_custom_call.1} parent=5 // pred_check_branch
        %176 = sbr.rel (%p174) target = $region28
      $region27: #{tpu_custom_call.1} parent=5 // pred_region
        // Predicated region
        $region29: #{tpu_custom_call.1} parent=27 // pred_check
          %p177 = pneg %p52
        $region30: #{tpu_custom_call.1} parent=27 // pred_check_branch
          %179 = sbr.rel (%p177) target = $region32
        $region31: #{tpu_custom_call.1} parent=27 // pred_region
          %s180 = sand.u32 %s42, 1
          %s181 = scalar_lea.sflag [#allocation6], %s180
          %s182 = sand.u32 %s42, 1
          %s183 = smul.addr %s182, 64
          %s184 = scalar_lea.vmem [#allocation5], %s183
          %s185 = ssub.s32 1, %s23
          %s186 = smul.u32 %s24, %s185
          %s187 = smul.u32 4, %s186
          %189 = vsyncadd %s181, 0
          %s190 = smul.addr %s187, 4
          %s191 = scalar_lea.hbm %s0, %s190
          %s192 = sshll.u32 %s191, 4
          %s193 = int_to_ptr.hbm [resolvable:$true] %s192
          %s194 = sshll.u32 %s184, 4
          %s195 = int_to_ptr.vmem [resolvable:$true] %s194
          %200 = dma.hbm_to_vmem [thread:$0]  %s193, 1024, %s195, %s181, 256, 256, 16
        $region32: #{tpu_custom_call.1} parent=27 // pred_fallthru
          _
      $region28: #{tpu_custom_call.1} parent=5 // pred_fallthru
        _
      %p201 = scmp.le.s32.totalorder 1, %s16
      %p202 = scmp.lt.s32.totalorder %s16, 3
      %p203 = pnand %p201, %p202
      %p204 = pneg %p203
      // Predicated region
      $region33: #{tpu_custom_call.1} parent=5 // pred_check
        _
      $region34: #{tpu_custom_call.1} parent=5 // pred_check_branch
        %206 = sbr.rel (%p203) target = $region36
      $region35: #{tpu_custom_call.1} parent=5 // pred_region
        %s207 = ssub.s32 %s16, 1
        %s208 = sand.u32 %s45, 1
        %s209 = scalar_lea.sflag [#allocation6], %s208
        %s210 = sand.u32 %s45, 1
        %s211 = smul.addr %s210, 64
        %s212 = scalar_lea.vmem [#allocation5], %s211
        // Predicated region
        $region37: #{tpu_custom_call.1} parent=35 // pred_check
          %p213 = pneg %p58
        $region38: #{tpu_custom_call.1} parent=35 // pred_check_branch
          %215 = sbr.rel (%p213) target = $region40
        $region39: #{tpu_custom_call.1} parent=35 // pred_region
          %217 = dma.done %s209, 1024
        $region40: #{tpu_custom_call.1} parent=35 // pred_fallthru
          _
        %s218 = sand.u32 %s45, 1
        %s219 = scalar_lea.sflag [#allocation6], %s218
        %s220 = sand.u32 %s45, 1
        %s221 = smul.addr %s220, 64
        %s222 = scalar_lea.vmem [#allocation5], %s221
        %p223 = pneg %p58
        %p224 = pneg %p55
        %p225 = pneg %p79
        %p226 = pneg %p76
        %p227 = pneg %p100
        %p228 = pneg %p97
        %p229 = pneg %p121
        %p230 = pneg %p118
        %p231 = pneg %p149
        %p232 = pneg %p146
        %s233 = sand.u32 %s136, 1
        %s234 = scalar_lea.sflag [#allocation7], %s233
        %s235 = sand.u32 %s136, 1
        %s236 = smul.addr %s235, 64
        %s237 = scalar_lea.vmem [#allocation8], %s236
        %s238 = ssub.s32 1, %s25
        %s239 = smul.u32 %s26, %s238
        %s240 = smul.u32 4, %s239
        %s241 = smul.u32 %s26, %s25
        %s242 = smul.u32 4, %s241
        %p244 = scmp.eq.s32.totalorder %s25, 0
        // Predicated region
        $region41: #{tpu_custom_call.1} parent=35 // pred_check
          %p245 = pneg %p244
        $region42: #{tpu_custom_call.1} parent=35 // pred_check_branch
          %247 = sbr.rel (%p245) target = $region44
        $region43: #{tpu_custom_call.1} parent=35 // pred_region
          %p248 = scmp.eq.s32.totalorder %s26, 0
          // Predicated region
          $region45: #{tpu_custom_call.1} parent=43 // pred_check
            %p249 = pneg %p248
          $region46: #{tpu_custom_call.1} parent=43 // pred_check_branch
            %251 = sbr.rel (%p249) target = $region48
          $region47: #{tpu_custom_call.1} parent=43 // pred_region
            %vm252 = vcmask 7168
            %253 = vst.msk [vmem:[#allocation3] sm:$0xff] %vm252, 0.0
            %254 = vst.msk [vmem:[#allocation3 + $0x8] sm:$0xff] %vm252, 0.0
            %255 = vst.msk [vmem:[#allocation4] sm:$0xff] %vm252, 0.0
            %256 = vst.msk [vmem:[#allocation4 + $0x8] sm:$0xff] %vm252, 0.0
          $region48: #{tpu_custom_call.1} parent=43 // pred_fallthru
            _
          %v257 = vld [vmem:[%s1] sm:$0xf]
          %v258 = vld [vmem:[%s1 + $0x4] sm:$0xf]
          %v259 = vld [vmem:[%s212] sm:$0xff]
          %v260 = vld [vmem:[%s212 + $0x8] sm:$0xff]
          %v261 = vld [vmem:[%s212 + $0x10] sm:$0xff]
          %v262 = vld [vmem:[%s212 + $0x18] sm:$0xff]
          %v263 = vld [vmem:[%s212 + $0x20] sm:$0xff]
          %v264 = vld [vmem:[%s212 + $0x28] sm:$0xff]
          %v265 = vld [vmem:[%s212 + $0x30] sm:$0x33]
          %v266 = vld [vmem:[%s212 + $0x38] sm:$0x33]
          %v269 = vunpack.c.l.b16 %v257
          %v270 = vunpack.c.l.b16 %v258
          %v271 = vpack.c.b16 %v270, %v269
          %v280 = vunpack.c.l.b16 %v259
          %v281 = vunpack.c.h.b16 %v259
          %v282 = vunpack.c.l.b16 %v260
          %v283 = vunpack.c.h.b16 %v260
          %v284 = vunpack.c.l.b16 %v261
          %v285 = vunpack.c.h.b16 %v261
          %v286 = vunpack.c.l.b16 %v262
          %v287 = vunpack.c.h.b16 %v262
          %v288 = vunpack.c.l.b16 %v263
          %v289 = vunpack.c.h.b16 %v263
          %v290 = vunpack.c.l.b16 %v264
          %v291 = vunpack.c.h.b16 %v264
          %v292 = vunpack.c.l.b16 %v265
          %v293 = vunpack.c.h.b16 %v265
          %v294 = vunpack.c.l.b16 %v266
          %v295 = vunpack.c.h.b16 %v266
          %v296 = vpack.c.b16 %v284, %v280
          %v297 = vpack.c.b16 %v285, %v281
          %v298 = vpack.c.b16 %v286, %v282
          %v299 = vpack.c.b16 %v287, %v283
          %v300 = vpack.c.b16 %v292, %v288
          %v301 = vpack.c.b16 %v293, %v289
          %v302 = vpack.c.b16 %v294, %v290
          %v303 = vpack.c.b16 %v295, %v291
          %vm308 = vcmask 220160
          %v310 = vsel %vm308, %v271, 0
          %vm312 = vcmask 1044480
          %vm313 = vcmask 1045504
          %v314 = vsel %vm312, 4294967295, 65535
          %v315 = vsel %vm313, %v314, 0
          %v317 = vand.u32 %v300, %v315
          %v320 = vand.u32 %v301, %v315
          %v323 = vand.u32 %v302, %v315
          %v326 = vand.u32 %v303, %v315
          %328 = vmatpush.bf16.msra.mxu0 0
          %329 = vmatpush.bf16.msra.mxu0 0
          %330 = vmatpush.bf16.msra.mxu0 0
          %331 = vmatpush.bf16.msra.mxu0 0
          %332 = vmatpush.bf16.msra.mxu0 0
          %333 = vmatpush.bf16.msra.mxu0 0
          %334 = vmatpush.bf16.msra.mxu0 %v317
          %335 = vmatpush.bf16.msra.mxu0 %v296
          %336 = vmatmul.bf16.gmra.mxu0 %v310
          %v337 = vpop.f32.mrf.mxu0
          %v338 = vadd.f32 0.0, %v337
          %v339 = vpop.f32.mrf.mxu0
          %v340 = vadd.f32 0.0, %v339
          %341 = vdwg.mxu0
          %342 = vmatpush.bf16.msra.mxu0 0
          %343 = vmatpush.bf16.msra.mxu0 0
          %344 = vmatpush.bf16.msra.mxu0 0
          %345 = vmatpush.bf16.msra.mxu0 0
          %346 = vmatpush.bf16.msra.mxu0 0
          %347 = vmatpush.bf16.msra.mxu0 0
          %348 = vmatpush.bf16.msra.mxu0 %v320
          %349 = vmatpush.bf16.msra.mxu0 %v297
          %350 = vmatmul.bf16.gmra.mxu0 %v310
          %v351 = vpop.f32.mrf.mxu0
          %v352 = vadd.f32 0.0, %v351
          %v353 = vpop.f32.mrf.mxu0
          %v354 = vadd.f32 0.0, %v353
          %355 = vdwg.mxu0
          %356 = vmatpush.bf16.msra.mxu0 0
          %357 = vmatpush.bf16.msra.mxu0 0
          %358 = vmatpush.bf16.msra.mxu0 0
          %359 = vmatpush.bf16.msra.mxu0 0
          %360 = vmatpush.bf16.msra.mxu0 0
          %361 = vmatpush.bf16.msra.mxu0 0
          %362 = vmatpush.bf16.msra.mxu0 %v323
          %363 = vmatpush.bf16.msra.mxu0 %v298
          %364 = vmatmul.bf16.gmra.mxu0 %v310
          %v365 = vpop.f32.mrf.mxu0
          %v366 = vadd.f32 0.0, %v365
          %v367 = vpop.f32.mrf.mxu0
          %v368 = vadd.f32 0.0, %v367
          %369 = vdwg.mxu0
          %370 = vmatpush.bf16.msra.mxu0 0
          %371 = vmatpush.bf16.msra.mxu0 0
          %372 = vmatpush.bf16.msra.mxu0 0
          %373 = vmatpush.bf16.msra.mxu0 0
          %374 = vmatpush.bf16.msra.mxu0 0
          %375 = vmatpush.bf16.msra.mxu0 0
          %376 = vmatpush.bf16.msra.mxu0 %v326
          %377 = vmatpush.bf16.msra.mxu0 %v299
          %378 = vmatmul.bf16.gmra.mxu0 %v310
          %v379 = vpop.f32.mrf.mxu0
          %v380 = vadd.f32 0.0, %v379
          %v381 = vpop.f32.mrf.mxu0
          %v382 = vadd.f32 0.0, %v381
          %383 = vdwg.mxu0
          %s384 = smul.u32 %s26, 8
          %s385 = smul.addr %s384, 8
          %s386 = scalar_lea.vmem [#allocation2], %s385
          %387 = vst [vmem:[%s386] sm:$0xff] %v338
          %388 = vst [vmem:[%s386 + $0x8] sm:$0xff] %v352
          %389 = vst [vmem:[%s386 + $0x10] sm:$0xff] %v366
          %390 = vst [vmem:[%s386 + $0x18] sm:$0xff] %v380
          %391 = vst [vmem:[%s386 + $0x20] sm:$0xff] %v340
          %392 = vst [vmem:[%s386 + $0x28] sm:$0xff] %v354
          %393 = vst [vmem:[%s386 + $0x30] sm:$0xff] %v368
          %394 = vst [vmem:[%s386 + $0x38] sm:$0xff] %v382
          %v395 = vld [vmem:[#allocation3] sm:$0xff]
          %v396 = vld [vmem:[#allocation3 + $0x8] sm:$0xff]
          %v397 = vadd.f32 %v338, %v352
          %v398 = vadd.f32 %v397, %v366
          %v399 = vadd.f32 %v398, %v380
          %400 = vadd.xlane.f32.xlu0 %v399
          %v401 = vpop.xlane.xlu0 %400
          %v402 = vadd.f32 %v340, %v354
          %v403 = vadd.f32 %v402, %v368
          %v404 = vadd.f32 %v403, %v382
          %405 = vadd.xlane.f32.xlu0 %v404
          %v406 = vpop.xlane.xlu0 %405
          %v407 = vadd.f32 %v395, %v401
          %v408 = vadd.f32 %v396, %v406
          %vm409 = vcmask 7168
          %410 = vst.msk [vmem:[#allocation3] sm:$0xff] %vm409, %v407
          %411 = vst.msk [vmem:[#allocation3 + $0x8] sm:$0xff] %vm409, %v408
          %v412 = vld [vmem:[#allocation4] sm:$0xff]
          %v413 = vld [vmem:[#allocation4 + $0x8] sm:$0xff]
          %v414 = vmul.f32 %v338, %v338
          %v415 = vmul.f32 %v352, %v352
          %v416 = vmul.f32 %v366, %v366
          %v417 = vmul.f32 %v380, %v380
          %v418 = vmul.f32 %v340, %v340
          %v419 = vmul.f32 %v354, %v354
          %v420 = vmul.f32 %v368, %v368
          %v421 = vmul.f32 %v382, %v382
          %v422 = vadd.f32 %v414, %v415
          %v423 = vadd.f32 %v422, %v416
          %v424 = vadd.f32 %v423, %v417
          %425 = vadd.xlane.f32.xlu0 %v424
          %v426 = vpop.xlane.xlu0 %425
          %v427 = vadd.f32 %v418, %v419
          %v428 = vadd.f32 %v427, %v420
          %v429 = vadd.f32 %v428, %v421
          %430 = vadd.xlane.f32.xlu0 %v429
          %v431 = vpop.xlane.xlu0 %430
          %v432 = vadd.f32 %v412, %v426
          %v433 = vadd.f32 %v413, %v431
          %434 = vst.msk [vmem:[#allocation4] sm:$0xff] %vm409, %v432
          %435 = vst.msk [vmem:[#allocation4 + $0x8] sm:$0xff] %vm409, %v433
        $region44: #{tpu_custom_call.1} parent=35 // pred_fallthru
          _
        %p436 = scmp.eq.s32.totalorder %s25, 1
        // Predicated region
        $region49: #{tpu_custom_call.1} parent=35 // pred_check
          %p437 = pneg %p436
        $region50: #{tpu_custom_call.1} parent=35 // pred_check_branch
          %439 = sbr.rel (%p437) target = $region52
        $region51: #{tpu_custom_call.1} parent=35 // pred_region
          %v440 = vld [vmem:[#allocation3] sm:$0xff]
          %v441 = vld [vmem:[#allocation3 + $0x8] sm:$0xff]
          %v442 = vld [vmem:[#allocation4] sm:$0xff]
          %v443 = vld [vmem:[#allocation4 + $0x8] sm:$0xff]
          %v445 = vrot.slane %v440, 4
          %v447 = vadd.f32 %v440, %v445
          %v448 = vadd.f32 %v447, %v441
          %v450 = vrot.slane %v441, 4
          %v452 = vadd.f32 %v448, %v450
          %v454 = vrot.slane %v442, 4
          %v456 = vadd.f32 %v442, %v454
          %v457 = vadd.f32 %v456, %v443
          %v459 = vrot.slane %v443, 4
          %v461 = vadd.f32 %v457, %v459
          %v462 = vmul.f32 %v452, 0.00048828125
          %v463 = vmul.f32 %v461, 0.00048828125
          %v464 = vmul.f32 %v462, %v462
          %v465 = vsub.f32 %v463, %v464
          %v466 = vmax.f32 %v465, 0.0
          %v467 = vld [vmem:[%s2] sm:$0xf]
          %v468 = vadd.f32 %v466, 1e-05
          %v469 = vrsqrt.pop %v468
          %v470 = vmul.f32 %v469, %v468
          %v471 = vmul.f32 %v470, %v469
          %v472 = vmul.f32 0.5, %v471
          %v473 = vsub.f32 1.5, %v472
          %v474 = vmul.f32 %v469, %v473
          %vm475 = vweird.f32 %v468
          %vm476 = vweird.f32 %v469
          %vm477 = vmor %vm475, %vm476
          %v478 = vsel %vm477, %v469, %v474
          %v479 = vmul.f32 %v467, %v478
          %v480 = vld [vmem:[%s3] sm:$0xf]
          %v481 = vmul.f32 %v462, %v479
          %v482 = vsub.f32 %v480, %v481
          %v484 = vrot.slane %v479, 4
          %vm486 = vcmask 1043456
          %v487 = vsel %vm486, %v479, %v484
          %v489 = vrot.slane %v482, 4
          %v491 = vsel %vm486, %v482, %v489
          %s492 = smul.u32 %s26, 8
          %s493 = smul.addr %s492, 8
          %s494 = scalar_lea.vmem [#allocation2], %s493
          %v495 = vld [vmem:[%s494] sm:$0xff]
          %v496 = vld [vmem:[%s494 + $0x8] sm:$0xff]
          %v497 = vld [vmem:[%s494 + $0x10] sm:$0xff]
          %v498 = vld [vmem:[%s494 + $0x18] sm:$0xff]
          %v499 = vld [vmem:[%s494 + $0x20] sm:$0xff]
          %v500 = vld [vmem:[%s494 + $0x28] sm:$0xff]
          %v501 = vld [vmem:[%s494 + $0x30] sm:$0xff]
          %v502 = vld [vmem:[%s494 + $0x38] sm:$0xff]
          %504 = vset.pattern.permute.xlu0 0
          %505 = vperm.xlu0 %504, %v487
          %v506 = vpop.permute.xlu0 %505
          %v508 = vmul.f32 %v495, %v506
          %v509 = vmul.f32 %v496, %v506
          %v510 = vmul.f32 %v497, %v506
          %v511 = vmul.f32 %v498, %v506
          %v512 = vmul.f32 %v499, %v506
          %v513 = vmul.f32 %v500, %v506
          %v514 = vmul.f32 %v501, %v506
          %v515 = vmul.f32 %v502, %v506
          %517 = vset.pattern.permute.xlu0 0
          %518 = vperm.xlu0 %517, %v491
          %v519 = vpop.permute.xlu0 %518
          %v521 = vadd.f32 %v508, %v519
          %v522 = vadd.f32 %v509, %v519
          %v523 = vadd.f32 %v510, %v519
          %v524 = vadd.f32 %v511, %v519
          %v525 = vadd.f32 %v512, %v519
          %v526 = vadd.f32 %v513, %v519
          %v527 = vadd.f32 %v514, %v519
          %v528 = vadd.f32 %v515, %v519
          %v529 = vmax.f32 %v521, 0.0
          %v530 = vmax.f32 %v522, 0.0
          %v531 = vmax.f32 %v523, 0.0
          %v532 = vmax.f32 %v524, 0.0
          %v533 = vmax.f32 %v525, 0.0
          %v534 = vmax.f32 %v526, 0.0
          %v535 = vmax.f32 %v527, 0.0
          %v536 = vmax.f32 %v528, 0.0
          %537 = vst [vmem:[%s237] sm:$0xff] %v529
          %538 = vst [vmem:[%s237 + $0x8] sm:$0xff] %v530
          %539 = vst [vmem:[%s237 + $0x10] sm:$0xff] %v531
          %540 = vst [vmem:[%s237 + $0x18] sm:$0xff] %v532
          %541 = vst [vmem:[%s237 + $0x20] sm:$0xff] %v533
          %542 = vst [vmem:[%s237 + $0x28] sm:$0xff] %v534
          %543 = vst [vmem:[%s237 + $0x30] sm:$0xff] %v535
          %544 = vst [vmem:[%s237 + $0x38] sm:$0xff] %v536
        $region52: #{tpu_custom_call.1} parent=35 // pred_fallthru
          _
        %s545 = sand.u32 %s136, 1
        %s546 = scalar_lea.sflag [#allocation7], %s545
        %s547 = sand.u32 %s136, 1
        %s548 = smul.addr %s547, 64
        %s549 = scalar_lea.vmem [#allocation8], %s548
        // Predicated region
        $region53: #{tpu_custom_call.1} parent=35 // pred_check
          %p550 = pneg %p146
        $region54: #{tpu_custom_call.1} parent=35 // pred_check_branch
          %552 = sbr.rel (%p550) target = $region56
        $region55: #{tpu_custom_call.1} parent=35 // pred_region
          %s553 = smul.u32 %s26, %s25
          %s554 = smul.u32 4, %s553
          %556 = vsyncadd %s546, 0
          %s557 = smul.addr %s554, 8
          %s558 = scalar_lea.hbm %s4, %s557
          %s559 = sshll.u32 %s549, 4
          %s560 = int_to_ptr.vmem [resolvable:$true] %s559
          %s561 = sshll.u32 %s558, 4
          %s562 = int_to_ptr.hbm [resolvable:$true] %s561
          %567 = dma.vmem_to_hbm [thread:$0]  %s560, 1024, %s562, %s546, 512, 512, 32
        $region56: #{tpu_custom_call.1} parent=35 // pred_fallthru
          _
      $region36: #{tpu_custom_call.1} parent=5 // pred_fallthru
        _
      %p568 = scmp.le.s32.totalorder 2, %s16
      // Predicated region
      $region57: #{tpu_custom_call.1} parent=5 // pred_check
        %p569 = pneg %p568
      $region58: #{tpu_custom_call.1} parent=5 // pred_check_branch
        %571 = sbr.rel (%p569) target = $region60
      $region59: #{tpu_custom_call.1} parent=5 // pred_region
        %s572 = ssub.s32 %s16, 2
        // Predicated region
        $region61: #{tpu_custom_call.1} parent=59 // pred_check
          %p573 = pneg %p152
        $region62: #{tpu_custom_call.1} parent=59 // pred_check_branch
          %575 = sbr.rel (%p573) target = $region64
        $region63: #{tpu_custom_call.1} parent=59 // pred_region
          %s576 = sand.u32 %s137, 1
          %s577 = scalar_lea.sflag [#allocation7], %s576
          %s578 = sand.u32 %s137, 1
          %s579 = smul.addr %s578, 64
          %s580 = scalar_lea.vmem [#allocation8], %s579
          %582 = dma.done %s577, 1024
        $region64: #{tpu_custom_call.1} parent=59 // pred_fallthru
          _
      $region60: #{tpu_custom_call.1} parent=5 // pred_fallthru
        _
    $region6: #{tpu_custom_call.1} parent=1 // loop_footer
      %s20 = sadd.s32 1, %s16
    $region7: #{tpu_custom_call.1} parent=1 // loop_footer_branch
      %15 = sbr.rel target = $region3
    $region8: #{tpu_custom_call.1} parent=1 // loop_exit
      _
    %583 = vsyncpa [#allocation6], 1
    %s584 = scalar_lea.sflag [#allocation6], 1
    %585 = vsyncpa %s584, 1
    %586 = vsyncpa [#allocation7], 1
    %s587 = scalar_lea.sflag [#allocation7], 1
    %588 = vsyncpa %s587, 1

</llo_original>
